<compile_context>
chip_gen: v7x
topology: tpu7x:2x2x1
jax: 0.10.0
libtpu: 0.0.40
codegen_flags: <defaults>
</compile_context>

<pallas_src>
import jax
import jax.numpy as jnp
from jax.experimental import pallas as pl
from jax.experimental.pallas import tpu as pltpu


def _round_up(x, m):
    return (x + m - 1) // m * m


def _make_kernel(Wp, L, is_shortcut, out_dtype):
    f32 = jnp.float32
    bf16 = jnp.bfloat16

    def shift(a, off):
        # y[:, k] = a[:, (k + off) % L]  (XLU lane rotation).  The circular
        # wrap only lands on border/tail lanes, which are masked or sliced.
        s = (-off) % L
        return a if s == 0 else pltpu.roll(a, shift=s, axis=1)

    def tap_stack(a):
        # (C_p, L) f32 -> (9*C_p, L) bf16 stack of the 9 tap-shifted planes,
        # K index = t*C_p + c with t = (dy+1)*3 + (dx+1)  (matches the packed
        # weight slabs).  Row rolls first, then column rolls: 8 rolls total.
        rows = [shift(a, dy * Wp) for dy in (-1, 0, 1)]
        planes = [shift(r, dx) for r in rows for dx in (-1, 0, 1)]
        # 8-sublane f32 pieces are tile-aligned -> cheap, well-supported
        # sublane concat; single cast to bf16 for the MXU.
        return jnp.concatenate(planes, axis=0).astype(bf16)

    def mm(w, a):
        # bf16 x bf16 -> f32 accumulation on the MXU (default precision).
        return jnp.dot(w, a, preferred_element_type=f32)

    def kernel(*refs):
        if is_shortcut:
            (x_ref, w1_ref, s1_ref, b1_ref, w2_ref, s2_ref, b2_ref,
             mask_ref, ws_ref, bs_ref, out_ref) = refs
        else:
            (x_ref, w1_ref, s1_ref, b1_ref, w2_ref, s2_ref, b2_ref,
             mask_ref, out_ref) = refs
            ws_ref = bs_ref = None

        x_bf = x_ref[...]                   # (Cin_p, L) bf16
        x = x_bf.astype(f32)
        mask = mask_ref[...]                # (1, L): 1.0 on interior pixels

        # ---- conv1 (3x3, no bias): one matmul, K = 9*Cin_p ----
        acc = mm(w1_ref[...], tap_stack(x))                     # (Cout_p, L)
        # folded BN1 + ReLU; re-zero border/tail so conv2 sees an implicitly
        # zero-padded input.
        h = jnp.maximum(acc * s1_ref[...] + b1_ref[...], 0.0) * mask

        # ---- conv2 (3x3, no bias): one matmul, K = 9*Cout_p ----
        acc2 = mm(w2_ref[...], tap_stack(h))
        y = jnp.maximum(acc2 * s2_ref[...] + b2_ref[...], 0.0)

        # ---- residual ----
        if is_shortcut:
            res = mm(ws_ref[...], x_bf) + bs_ref[...]   # 1x1 conv with bias
        else:
            res = x                                     # identity (Cin == Cout)

        # Mask the stored output so the padded plane is directly consumable
        # by a chained block (and padded channels/lanes are exact zeros).
        out_ref[...] = ((y + res) * mask).astype(out_dtype)

    return kernel


def conv_block_res_pallas(x, params):
    """x: (N, Cin, H, W) float32 NCHW -> (N, Cout, H, W) float32."""
    N, Cin, H, W = x.shape
    w1 = params["w1"]
    Cout = w1.shape[0]
    is_shortcut = (Cin != Cout)
    eps = 1e-5
    f32, bf16 = jnp.float32, jnp.bfloat16

    Hp, Wp = H + 2, W + 2
    Lpad = Hp * Wp
    Lp = _round_up(Lpad, 128)       # per-image lane-dense flattened length
    L = N * Lp                      # batch folded onto the lane axis
    Cin_p = _round_up(Cin, 8)       # sublane-aligned channel counts
    Cout_p = _round_up(Cout, 8)

    # Fold eval-mode BatchNorm into per-channel scale/shift.
    def fold(g, b, m, v):
        s = g.astype(f32) / jnp.sqrt(v.astype(f32) + eps)
        return s, b.astype(f32) - m.astype(f32) * s

    s1, b1 = fold(params["bn1_gamma"], params["bn1_beta"],
                  params["bn1_mean"], params["bn1_var"])
    s2, b2 = fold(params["bn2_gamma"], params["bn2_beta"],
                  params["bn2_mean"], params["bn2_var"])

    def col(v):  # (Cout,) -> (Cout_p, 1) f32 column for lane-broadcast
        return jnp.pad(v.astype(f32), (0, Cout_p - Cout))[:, None]

    def pack3x3(w, cin_pad):
        # (Co, Ci, 3, 3) -> (Cout_p, 9*cin_pad) bf16 slab with
        # K index = t*cin_pad + cin, t = ky*3 + kx (matches tap_stack order).
        co, ci = w.shape[0], w.shape[1]
        wt = jnp.transpose(w.astype(f32), (2, 3, 0, 1)).reshape(9, co, ci)
        wt = jnp.pad(wt, ((0, 0), (0, Cout_p - co), (0, cin_pad - ci)))
        return (jnp.transpose(wt, (1, 0, 2))
                .reshape(Cout_p, 9 * cin_pad).astype(bf16))

    # Activations: zero-pad spatially, flatten (H+2)*(W+2) onto lanes, pad
    # lanes to x128, fold batch onto lanes, pad channels to x8, cast to bf16.
    xpad = jnp.pad(x.astype(f32), ((0, 0), (0, Cin_p - Cin), (1, 1), (1, 1)))
    xflat = jnp.pad(xpad.reshape(N, Cin_p, Lpad),
                    ((0, 0), (0, 0), (0, Lp - Lpad)))
    xflat = jnp.transpose(xflat, (1, 0, 2)).reshape(Cin_p, L).astype(bf16)

    w1p = pack3x3(w1, Cin_p)                 # (Cout_p, 9*Cin_p)  bf16
    w2p = pack3x3(params["w2"], Cout_p)      # (Cout_p, 9*Cout_p) bf16

    # Interior mask over the folded lane axis: 1.0 exactly on original HxW
    # pixels of each image (tail padding and spatial halo are 0).
    q = jnp.arange(L) % Lp
    qi, qj = q // Wp, q % Wp
    mask = (((qi >= 1) & (qi <= H) & (qj >= 1) & (qj <= W))
            .astype(f32))[None, :]           # (1, L)

    args = [xflat, w1p, col(s1), col(b1), w2p, col(s2), col(b2), mask]
    if is_shortcut:
        wsp = jnp.pad(params["ws"].reshape(Cout, Cin).astype(f32),
                      ((0, Cout_p - Cout), (0, Cin_p - Cin))).astype(bf16)
        args += [wsp, col(params["bs"])]

    kernel = _make_kernel(Wp, L, is_shortcut, f32)

    vmem_spec = pl.BlockSpec(memory_space=pltpu.MemorySpace.VMEM)
    out = pl.pallas_call(
        kernel,
        out_shape=jax.ShapeDtypeStruct((Cout_p, L), f32),
        in_specs=[vmem_spec] * len(args),
        out_specs=vmem_spec,
    )(*args)

    # Unpack to NCHW (a chained block could instead consume the padded plane
    # directly, since the output is already interior-masked).
    out = out.reshape(Cout_p, N, Lp).transpose(1, 0, 2)[:, :Cout, :Lpad]
    out = out.reshape(N, Cout, Hp, Wp)[:, :, 1:H + 1, 1:W + 1]
    return out


def conv_block_res_ref(x, params):
    """Pure-JAX f32 reference (eval-mode BN), NCHW."""
    eps = 1e-5
    dn = ("NCHW", "OIHW", "NCHW")

    def bn(h, g, b, m, v):
        return ((h - m[None, :, None, None])
                / jnp.sqrt(v + eps)[None, :, None, None]
                * g[None, :, None, None] + b[None, :, None, None])

    h = jax.lax.conv_general_dilated(x, params["w1"], (1, 1), ((1, 1), (1, 1)),
                                     dimension_numbers=dn)
    h = jax.nn.relu(bn(h, params["bn1_gamma"], params["bn1_beta"],
                       params["bn1_mean"], params["bn1_var"]))
    h = jax.lax.conv_general_dilated(h, params["w2"], (1, 1), ((1, 1), (1, 1)),
                                     dimension_numbers=dn)
    h = jax.nn.relu(bn(h, params["bn2_gamma"], params["bn2_beta"],
                       params["bn2_mean"], params["bn2_var"]))
    if "ws" in params:
        sc = jax.lax.conv_general_dilated(x, params["ws"], (1, 1),
                                          ((0, 0), (0, 0)),
                                          dimension_numbers=dn)
        return h + sc + params["bs"][None, :, None, None]
    return h + x


def _make_params(key, cin, cout, shortcut):
    ks = jax.random.split(key, 12)
    p = {
        "w1": jax.random.normal(ks[0], (cout, cin, 3, 3), jnp.float32) * 0.2,
        "bn1_gamma": 1.0 + 0.1 * jax.random.normal(ks[1], (cout,), jnp.float32),
        "bn1_beta": 0.1 * jax.random.normal(ks[2], (cout,), jnp.float32),
        "bn1_mean": 0.1 * jax.random.normal(ks[3], (cout,), jnp.float32),
        "bn1_var": jax.random.uniform(ks[4], (cout,), jnp.float32, 0.5, 1.5),
        "w2": jax.random.normal(ks[5], (cout, cout, 3, 3), jnp.float32) * 0.2,
        "bn2_gamma": 1.0 + 0.1 * jax.random.normal(ks[6], (cout,), jnp.float32),
        "bn2_beta": 0.1 * jax.random.normal(ks[7], (cout,), jnp.float32),
        "bn2_mean": 0.1 * jax.random.normal(ks[8], (cout,), jnp.float32),
        "bn2_var": jax.random.uniform(ks[9], (cout,), jnp.float32, 0.5, 1.5),
    }
    if shortcut:
        p["ws"] = jax.random.normal(ks[10], (cout, cin, 1, 1), jnp.float32) * 0.2
        p["bs"] = 0.1 * jax.random.normal(ks[11], (cout,), jnp.float32)
    return p


def _check(out, ref, name):
    # bf16 MXU operands (f32 accumulation) -> compare with a relative budget.
    err = float(jnp.max(jnp.abs(out - ref)))
    tol = 2e-2 + 5e-2 * float(jnp.max(jnp.abs(ref)))
    if err > tol:
        raise AssertionError(f"{name} mismatch: max abs err {err} > tol {tol}")


if __name__ == "__main__":
    N, H, W = 2, 16, 16
    k1, k2, kx1, kx2 = jax.random.split(jax.random.PRNGKey(0), 4)

    # Case 1: in_channels != out_channels -> exercises the biased 1x1 shortcut.
    Cin, Cout = 4, 8
    params = _make_params(k1, Cin, Cout, shortcut=True)
    x = jax.random.normal(kx1, (N, Cin, H, W), jnp.float32)
    out = conv_block_res_pallas(x, params)
    jax.block_until_ready(out)
    assert out.shape == (N, Cout, H, W)
    _check(out, conv_block_res_ref(x, params), "shortcut case")

    # Case 2: in_channels == out_channels -> identity residual path.
    params2 = _make_params(k2, 8, 8, shortcut=False)
    x2 = jax.random.normal(kx2, (N, 8, H, W), jnp.float32)
    out2 = conv_block_res_pallas(x2, params2)
    jax.block_until_ready(out2)
    _check(out2, conv_block_res_ref(x2, params2), "identity case")

    print("KERNEL_OK")
</pallas_src>

<mosaic_0001>
module attributes {stable_mosaic.version = 11 : i64} {
  func.func @kernel(%arg0: memref<8x768xbf16, #tpu.memory_space<vmem>>, %arg1: memref<8x72xbf16, #tpu.memory_space<vmem>>, %arg2: memref<8x1xf32, #tpu.memory_space<vmem>>, %arg3: memref<8x1xf32, #tpu.memory_space<vmem>>, %arg4: memref<8x72xbf16, #tpu.memory_space<vmem>>, %arg5: memref<8x1xf32, #tpu.memory_space<vmem>>, %arg6: memref<8x1xf32, #tpu.memory_space<vmem>>, %arg7: memref<1x768xf32, #tpu.memory_space<vmem>>, %arg8: memref<8x8xbf16, #tpu.memory_space<vmem>>, %arg9: memref<8x1xf32, #tpu.memory_space<vmem>>, %arg10: memref<8x768xf32, #tpu.memory_space<vmem>>) attributes {dimension_semantics = [], scalar_prefetch = 0 : i64, scratch_operands = 0 : i64, tpu.core_type = #tpu.core_type<tc>} {
    %c0 = arith.constant 0 : index
    %c0_0 = arith.constant 0 : index
    %0 = vector.load %arg0[%c0, %c0_0] : memref<8x768xbf16, #tpu.memory_space<vmem>>, vector<8x768xbf16>
    %1 = arith.extf %0 : vector<8x768xbf16> to vector<8x768xf32>
    %c0_1 = arith.constant 0 : index
    %c0_2 = arith.constant 0 : index
    %2 = vector.load %arg7[%c0_1, %c0_2] : memref<1x768xf32, #tpu.memory_space<vmem>>, vector<1x768xf32>
    %c0_3 = arith.constant 0 : index
    %c0_4 = arith.constant 0 : index
    %3 = vector.load %arg1[%c0_3, %c0_4] : memref<8x72xbf16, #tpu.memory_space<vmem>>, vector<8x72xbf16>
    %c18_i32 = arith.constant 18 : i32
    %4 = tpu.dynamic_rotate %1 by %c18_i32 dim 1 : vector<8x768xf32>, i32 -> vector<8x768xf32>
    %c750_i32 = arith.constant 750 : i32
    %5 = tpu.dynamic_rotate %1 by %c750_i32 dim 1 : vector<8x768xf32>, i32 -> vector<8x768xf32>
    %c1_i32 = arith.constant 1 : i32
    %6 = tpu.dynamic_rotate %4 by %c1_i32 dim 1 : vector<8x768xf32>, i32 -> vector<8x768xf32>
    %c767_i32 = arith.constant 767 : i32
    %7 = tpu.dynamic_rotate %4 by %c767_i32 dim 1 : vector<8x768xf32>, i32 -> vector<8x768xf32>
    %c1_i32_5 = arith.constant 1 : i32
    %8 = tpu.dynamic_rotate %1 by %c1_i32_5 dim 1 : vector<8x768xf32>, i32 -> vector<8x768xf32>
    %c767_i32_6 = arith.constant 767 : i32
    %9 = tpu.dynamic_rotate %1 by %c767_i32_6 dim 1 : vector<8x768xf32>, i32 -> vector<8x768xf32>
    %c1_i32_7 = arith.constant 1 : i32
    %10 = tpu.dynamic_rotate %5 by %c1_i32_7 dim 1 : vector<8x768xf32>, i32 -> vector<8x768xf32>
    %c767_i32_8 = arith.constant 767 : i32
    %11 = tpu.dynamic_rotate %5 by %c767_i32_8 dim 1 : vector<8x768xf32>, i32 -> vector<8x768xf32>
    %12 = tpu.concatenate %6, %4, %7, %8, %1, %9, %10, %5, %11 in 0 : vector<8x768xf32>, vector<8x768xf32>, vector<8x768xf32>, vector<8x768xf32>, vector<8x768xf32>, vector<8x768xf32>, vector<8x768xf32>, vector<8x768xf32>, vector<8x768xf32> -> vector<72x768xf32>
    %13 = arith.truncf %12 : vector<72x768xf32> to vector<72x768xbf16>
    %cst = arith.constant dense<0.000000e+00> : vector<8x768xf32>
    %14 = tpu.matmul %3, %13, %cst {dimension_numbers = #tpu.dot_dimension_numbers<[1], [0], [0], [1], [0, 0, 1, 1], [], []>} : vector<8x72xbf16>, vector<72x768xbf16>, vector<8x768xf32> -> vector<8x768xf32>
    %c0_9 = arith.constant 0 : index
    %c0_10 = arith.constant 0 : index
    %15 = vector.load %arg2[%c0_9, %c0_10] : memref<8x1xf32, #tpu.memory_space<vmem>>, vector<8x1xf32>
    %16 = vector.broadcast %15 : vector<8x1xf32> to vector<8x768xf32>
    %17 = arith.mulf %14, %16 : vector<8x768xf32>
    %c0_11 = arith.constant 0 : index
    %c0_12 = arith.constant 0 : index
    %18 = vector.load %arg3[%c0_11, %c0_12] : memref<8x1xf32, #tpu.memory_space<vmem>>, vector<8x1xf32>
    %19 = vector.broadcast %18 : vector<8x1xf32> to vector<8x768xf32>
    %20 = arith.addf %17, %19 : vector<8x768xf32>
    %cst_13 = arith.constant 0.000000e+00 : f32
    %21 = vector.broadcast %cst_13 : f32 to vector<8x768xf32>
    %22 = arith.maximumf %20, %21 : vector<8x768xf32>
    %23 = vector.broadcast %2 : vector<1x768xf32> to vector<8x768xf32>
    %24 = arith.mulf %22, %23 : vector<8x768xf32>
    %c0_14 = arith.constant 0 : index
    %c0_15 = arith.constant 0 : index
    %25 = vector.load %arg4[%c0_14, %c0_15] : memref<8x72xbf16, #tpu.memory_space<vmem>>, vector<8x72xbf16>
    %c18_i32_16 = arith.constant 18 : i32
    %26 = tpu.dynamic_rotate %24 by %c18_i32_16 dim 1 : vector<8x768xf32>, i32 -> vector<8x768xf32>
    %c750_i32_17 = arith.constant 750 : i32
    %27 = tpu.dynamic_rotate %24 by %c750_i32_17 dim 1 : vector<8x768xf32>, i32 -> vector<8x768xf32>
    %c1_i32_18 = arith.constant 1 : i32
    %28 = tpu.dynamic_rotate %26 by %c1_i32_18 dim 1 : vector<8x768xf32>, i32 -> vector<8x768xf32>
    %c767_i32_19 = arith.constant 767 : i32
    %29 = tpu.dynamic_rotate %26 by %c767_i32_19 dim 1 : vector<8x768xf32>, i32 -> vector<8x768xf32>
    %c1_i32_20 = arith.constant 1 : i32
    %30 = tpu.dynamic_rotate %24 by %c1_i32_20 dim 1 : vector<8x768xf32>, i32 -> vector<8x768xf32>
    %c767_i32_21 = arith.constant 767 : i32
    %31 = tpu.dynamic_rotate %24 by %c767_i32_21 dim 1 : vector<8x768xf32>, i32 -> vector<8x768xf32>
    %c1_i32_22 = arith.constant 1 : i32
    %32 = tpu.dynamic_rotate %27 by %c1_i32_22 dim 1 : vector<8x768xf32>, i32 -> vector<8x768xf32>
    %c767_i32_23 = arith.constant 767 : i32
    %33 = tpu.dynamic_rotate %27 by %c767_i32_23 dim 1 : vector<8x768xf32>, i32 -> vector<8x768xf32>
    %34 = tpu.concatenate %28, %26, %29, %30, %24, %31, %32, %27, %33 in 0 : vector<8x768xf32>, vector<8x768xf32>, vector<8x768xf32>, vector<8x768xf32>, vector<8x768xf32>, vector<8x768xf32>, vector<8x768xf32>, vector<8x768xf32>, vector<8x768xf32> -> vector<72x768xf32>
    %35 = arith.truncf %34 : vector<72x768xf32> to vector<72x768xbf16>
    %cst_24 = arith.constant dense<0.000000e+00> : vector<8x768xf32>
    %36 = tpu.matmul %25, %35, %cst_24 {dimension_numbers = #tpu.dot_dimension_numbers<[1], [0], [0], [1], [0, 0, 1, 1], [], []>} : vector<8x72xbf16>, vector<72x768xbf16>, vector<8x768xf32> -> vector<8x768xf32>
    %c0_25 = arith.constant 0 : index
    %c0_26 = arith.constant 0 : index
    %37 = vector.load %arg5[%c0_25, %c0_26] : memref<8x1xf32, #tpu.memory_space<vmem>>, vector<8x1xf32>
    %38 = vector.broadcast %37 : vector<8x1xf32> to vector<8x768xf32>
    %39 = arith.mulf %36, %38 : vector<8x768xf32>
    %c0_27 = arith.constant 0 : index
    %c0_28 = arith.constant 0 : index
    %40 = vector.load %arg6[%c0_27, %c0_28] : memref<8x1xf32, #tpu.memory_space<vmem>>, vector<8x1xf32>
    %41 = vector.broadcast %40 : vector<8x1xf32> to vector<8x768xf32>
    %42 = arith.addf %39, %41 : vector<8x768xf32>
    %cst_29 = arith.constant 0.000000e+00 : f32
    %43 = vector.broadcast %cst_29 : f32 to vector<8x768xf32>
    %44 = arith.maximumf %42, %43 : vector<8x768xf32>
    %c0_30 = arith.constant 0 : index
    %c0_31 = arith.constant 0 : index
    %45 = vector.load %arg8[%c0_30, %c0_31] : memref<8x8xbf16, #tpu.memory_space<vmem>>, vector<8x8xbf16>
    %cst_32 = arith.constant dense<0.000000e+00> : vector<8x768xf32>
    %46 = tpu.matmul %45, %0, %cst_32 {dimension_numbers = #tpu.dot_dimension_numbers<[1], [0], [0], [1], [0, 0, 1, 1], [], []>} : vector<8x8xbf16>, vector<8x768xbf16>, vector<8x768xf32> -> vector<8x768xf32>
    %c0_33 = arith.constant 0 : index
    %c0_34 = arith.constant 0 : index
    %47 = vector.load %arg9[%c0_33, %c0_34] : memref<8x1xf32, #tpu.memory_space<vmem>>, vector<8x1xf32>
    %48 = vector.broadcast %47 : vector<8x1xf32> to vector<8x768xf32>
    %49 = arith.addf %46, %48 : vector<8x768xf32>
    %50 = arith.addf %44, %49 : vector<8x768xf32>
    %51 = vector.broadcast %2 : vector<1x768xf32> to vector<8x768xf32>
    %52 = arith.mulf %50, %51 : vector<8x768xf32>
    %c0_35 = arith.constant 0 : index
    %c0_36 = arith.constant 0 : index
    %53 = vector.load %arg10[%c0_35, %c0_36] : memref<8x768xf32, #tpu.memory_space<vmem>>, vector<8x768xf32>
    tpu.vector_store %arg10[%c0_35, %c0_36], %52 {strides = array<i32>} : memref<8x768xf32, #tpu.memory_space<vmem>>, vector<8x768xf32>,
    return
  }
}

</mosaic_0001>

<llo_original>
// kernel: tpu_custom_call.1
$region0: #{tpu_custom_call.1}
  #allocation0 [shape = 'u32[]', space=smem, size = 0x4, offset = 0x4, fixed_abs, tag = 'smem constant byte address 0x4 - core index']
  #allocation1 [shape = 'u32[144,128]{1,0:T(1,128)}', space=vmem, size = 0x12000, scoped, tag = 'internal scratch']
  %s0 = inlined_call_operand.vmem [shape: bf16[8,768], index: 0, kind: input, shape index: {}]
  %s1 = inlined_call_operand.vmem [shape: bf16[8,72], index: 1, kind: input, shape index: {}]
  %s2 = inlined_call_operand.vmem [shape: f32[8,1], index: 2, kind: input, shape index: {}]
  %s3 = inlined_call_operand.vmem [shape: f32[8,1], index: 3, kind: input, shape index: {}]
  %s4 = inlined_call_operand.vmem [shape: bf16[8,72], index: 4, kind: input, shape index: {}]
  %s5 = inlined_call_operand.vmem [shape: f32[8,1], index: 5, kind: input, shape index: {}]
  %s6 = inlined_call_operand.vmem [shape: f32[8,1], index: 6, kind: input, shape index: {}]
  %s7 = inlined_call_operand.vmem [shape: f32[1,768], index: 7, kind: input, shape index: {}]
  %s8 = inlined_call_operand.vmem [shape: bf16[8,8], index: 8, kind: input, shape index: {}]
  %s9 = inlined_call_operand.vmem [shape: f32[8,1], index: 9, kind: input, shape index: {}]
  %s10 = inlined_call_operand.hbm [shape: f32[8,768], index: 10, kind: output, shape index: {}]
  %s11 = sld [smem:[#allocation0]]
  $region50: #{tpu_custom_call.1} parent=0
    _
  %s13 = ssub.s32 1, %s11
  %s14 = scalar_select 0, %s13, %s11
  $region1: #{tpu_custom_call.1} parent=0
    #allocation2 [shape = 'u8[24576]{0}', space=vmem, size = 0x6000, scoped, tag = 'output window, operand 0, single buffered']
    #allocation3 [shape = 's32[1]{0}', space=sflag, size = 0x4, scoped, tag = 'scoped memory for tpu_custom_call.1']
    %15 = vsyncpa [#allocation3], 0
    // Predicated region
    $region2: #{tpu_custom_call.1} parent=1 // pred_check
      _
    $region3: #{tpu_custom_call.1} parent=1 // pred_check_branch
      %17 = sbr.rel (0) target = $region5
    $region4: #{tpu_custom_call.1} parent=1 // pred_region
      _
    $region5: #{tpu_custom_call.1} parent=1 // pred_fallthru
      _
    // Predicated region
    $region6: #{tpu_custom_call.1} parent=1 // pred_check
      _
    $region7: #{tpu_custom_call.1} parent=1 // pred_check_branch
      %19 = sbr.rel (0) target = $region9
    $region8: #{tpu_custom_call.1} parent=1 // pred_region
      _
    $region9: #{tpu_custom_call.1} parent=1 // pred_fallthru
      _
    // Predicated region
    $region10: #{tpu_custom_call.1} parent=1 // pred_check
      _
    $region11: #{tpu_custom_call.1} parent=1 // pred_check_branch
      %21 = sbr.rel (0) target = $region13
    $region12: #{tpu_custom_call.1} parent=1 // pred_region
      _
    $region13: #{tpu_custom_call.1} parent=1 // pred_fallthru
      _
    // Predicated region
    $region14: #{tpu_custom_call.1} parent=1 // pred_check
      _
    $region15: #{tpu_custom_call.1} parent=1 // pred_check_branch
      %23 = sbr.rel (0) target = $region17
    $region16: #{tpu_custom_call.1} parent=1 // pred_region
      _
    $region17: #{tpu_custom_call.1} parent=1 // pred_fallthru
      _
    // Predicated region
    $region18: #{tpu_custom_call.1} parent=1 // pred_check
      _
    $region19: #{tpu_custom_call.1} parent=1 // pred_check_branch
      %25 = sbr.rel (0) target = $region21
    $region20: #{tpu_custom_call.1} parent=1 // pred_region
      _
    $region21: #{tpu_custom_call.1} parent=1 // pred_fallthru
      _
    // Predicated region
    $region22: #{tpu_custom_call.1} parent=1 // pred_check
      _
    $region23: #{tpu_custom_call.1} parent=1 // pred_check_branch
      %27 = sbr.rel (0) target = $region25
    $region24: #{tpu_custom_call.1} parent=1 // pred_region
      _
    $region25: #{tpu_custom_call.1} parent=1 // pred_fallthru
      _
    // Predicated region
    $region26: #{tpu_custom_call.1} parent=1 // pred_check
      _
    $region27: #{tpu_custom_call.1} parent=1 // pred_check_branch
      %29 = sbr.rel (0) target = $region29
    $region28: #{tpu_custom_call.1} parent=1 // pred_region
      _
    $region29: #{tpu_custom_call.1} parent=1 // pred_fallthru
      _
    // Predicated region
    $region30: #{tpu_custom_call.1} parent=1 // pred_check
      _
    $region31: #{tpu_custom_call.1} parent=1 // pred_check_branch
      %31 = sbr.rel (0) target = $region33
    $region32: #{tpu_custom_call.1} parent=1 // pred_region
      _
    $region33: #{tpu_custom_call.1} parent=1 // pred_fallthru
      _
    // Predicated region
    $region34: #{tpu_custom_call.1} parent=1 // pred_check
      _
    $region35: #{tpu_custom_call.1} parent=1 // pred_check_branch
      %33 = sbr.rel (0) target = $region37
    $region36: #{tpu_custom_call.1} parent=1 // pred_region
      _
    $region37: #{tpu_custom_call.1} parent=1 // pred_fallthru
      _
    // Predicated region
    $region38: #{tpu_custom_call.1} parent=1 // pred_check
      _
    $region39: #{tpu_custom_call.1} parent=1 // pred_check_branch
      %35 = sbr.rel (0) target = $region41
    $region40: #{tpu_custom_call.1} parent=1 // pred_region
      _
    $region41: #{tpu_custom_call.1} parent=1 // pred_fallthru
      _
    %v37 = vld [vmem:[%s0] sm:$0xff]
    %v38 = vld [vmem:[%s0 + $0x8] sm:$0xff]
    %v39 = vld [vmem:[%s0 + $0x10] sm:$0xff]
    %v40 = vunpack.c.l.bf16 %v37
    %v41 = vunpack.c.h.bf16 %v37
    %v42 = vunpack.c.l.bf16 %v38
    %v43 = vunpack.c.h.bf16 %v38
    %v44 = vunpack.c.l.bf16 %v39
    %v45 = vunpack.c.h.bf16 %v39
    %v46 = vld [vmem:[%s7] sm:$0x3f]
    %v47 = vld [vmem:[%s1] sm:$0xf]
    %48 = vrot.lane.b32.xlu0 %v40, 18
    %v49 = vpop.permute.xlu0 %48
    %50 = vrot.lane.b32.xlu0 %v41, 18
    %v51 = vpop.permute.xlu0 %50
    %52 = vrot.lane.b32.xlu0 %v42, 18
    %v53 = vpop.permute.xlu0 %52
    %54 = vrot.lane.b32.xlu0 %v43, 18
    %v55 = vpop.permute.xlu0 %54
    %56 = vrot.lane.b32.xlu0 %v44, 18
    %v57 = vpop.permute.xlu0 %56
    %58 = vrot.lane.b32.xlu0 %v45, 18
    %v59 = vpop.permute.xlu0 %58
    %v60 = vlaneseq
    %v61 = vand.u32 %v60, 127
    %vm62 = vcmp.lt.s32.totalorder %v61, 18
    %v63 = vsel %vm62, %v57, %v59
    %v64 = vsel %vm62, %v55, %v57
    %v65 = vsel %vm62, %v53, %v55
    %v66 = vsel %vm62, %v51, %v53
    %v67 = vsel %vm62, %v49, %v51
    %v68 = vsel %vm62, %v59, %v49
    %69 = vrot.lane.b32.xlu0 %v40, 110
    %v70 = vpop.permute.xlu0 %69
    %71 = vrot.lane.b32.xlu0 %v41, 110
    %v72 = vpop.permute.xlu0 %71
    %73 = vrot.lane.b32.xlu0 %v42, 110
    %v74 = vpop.permute.xlu0 %73
    %75 = vrot.lane.b32.xlu0 %v43, 110
    %v76 = vpop.permute.xlu0 %75
    %77 = vrot.lane.b32.xlu0 %v44, 110
    %v78 = vpop.permute.xlu0 %77
    %79 = vrot.lane.b32.xlu0 %v45, 110
    %v80 = vpop.permute.xlu0 %79
    %vm81 = vcmp.lt.s32.totalorder %v61, 110
    %v82 = vsel %vm81, %v78, %v80
    %v83 = vsel %vm81, %v76, %v78
    %v84 = vsel %vm81, %v74, %v76
    %v85 = vsel %vm81, %v72, %v74
    %v86 = vsel %vm81, %v70, %v72
    %v87 = vsel %vm81, %v80, %v70
    %88 = vrot.lane.b32.xlu0 %v68, 1
    %v89 = vpop.permute.xlu0 %88
    %90 = vrot.lane.b32.xlu0 %v67, 1
    %v91 = vpop.permute.xlu0 %90
    %92 = vrot.lane.b32.xlu0 %v66, 1
    %v93 = vpop.permute.xlu0 %92
    %94 = vrot.lane.b32.xlu0 %v65, 1
    %v95 = vpop.permute.xlu0 %94
    %96 = vrot.lane.b32.xlu0 %v64, 1
    %v97 = vpop.permute.xlu0 %96
    %98 = vrot.lane.b32.xlu0 %v63, 1
    %v99 = vpop.permute.xlu0 %98
    %vm100 = vcmp.lt.s32.totalorder %v61, 1
    %v101 = vsel %vm100, %v97, %v99
    %v102 = vsel %vm100, %v95, %v97
    %v103 = vsel %vm100, %v93, %v95
    %v104 = vsel %vm100, %v91, %v93
    %v105 = vsel %vm100, %v89, %v91
    %v106 = vsel %vm100, %v99, %v89
    %107 = vrot.lane.b32.xlu0 %v68, 127
    %v108 = vpop.permute.xlu0 %107
    %109 = vrot.lane.b32.xlu0 %v67, 127
    %v110 = vpop.permute.xlu0 %109
    %111 = vrot.lane.b32.xlu0 %v66, 127
    %v112 = vpop.permute.xlu0 %111
    %113 = vrot.lane.b32.xlu0 %v65, 127
    %v114 = vpop.permute.xlu0 %113
    %115 = vrot.lane.b32.xlu0 %v64, 127
    %v116 = vpop.permute.xlu0 %115
    %117 = vrot.lane.b32.xlu0 %v63, 127
    %v118 = vpop.permute.xlu0 %117
    %vm119 = vcmp.lt.s32.totalorder %v61, 127
    %v120 = vsel %vm119, %v116, %v118
    %v121 = vsel %vm119, %v114, %v116
    %v122 = vsel %vm119, %v112, %v114
    %v123 = vsel %vm119, %v110, %v112
    %v124 = vsel %vm119, %v108, %v110
    %v125 = vsel %vm119, %v118, %v108
    %126 = vrot.lane.b32.xlu0 %v40, 1
    %v127 = vpop.permute.xlu0 %126
    %128 = vrot.lane.b32.xlu0 %v41, 1
    %v129 = vpop.permute.xlu0 %128
    %130 = vrot.lane.b32.xlu0 %v42, 1
    %v131 = vpop.permute.xlu0 %130
    %132 = vrot.lane.b32.xlu0 %v43, 1
    %v133 = vpop.permute.xlu0 %132
    %134 = vrot.lane.b32.xlu0 %v44, 1
    %v135 = vpop.permute.xlu0 %134
    %136 = vrot.lane.b32.xlu0 %v45, 1
    %v137 = vpop.permute.xlu0 %136
    %v138 = vsel %vm100, %v135, %v137
    %v139 = vsel %vm100, %v133, %v135
    %v140 = vsel %vm100, %v131, %v133
    %v141 = vsel %vm100, %v129, %v131
    %v142 = vsel %vm100, %v127, %v129
    %v143 = vsel %vm100, %v137, %v127
    %144 = vrot.lane.b32.xlu0 %v40, 127
    %v145 = vpop.permute.xlu0 %144
    %146 = vrot.lane.b32.xlu0 %v41, 127
    %v147 = vpop.permute.xlu0 %146
    %148 = vrot.lane.b32.xlu0 %v42, 127
    %v149 = vpop.permute.xlu0 %148
    %150 = vrot.lane.b32.xlu0 %v43, 127
    %v151 = vpop.permute.xlu0 %150
    %152 = vrot.lane.b32.xlu0 %v44, 127
    %v153 = vpop.permute.xlu0 %152
    %154 = vrot.lane.b32.xlu0 %v45, 127
    %v155 = vpop.permute.xlu0 %154
    %v156 = vsel %vm119, %v153, %v155
    %v157 = vsel %vm119, %v151, %v153
    %v158 = vsel %vm119, %v149, %v151
    %v159 = vsel %vm119, %v147, %v149
    %v160 = vsel %vm119, %v145, %v147
    %v161 = vsel %vm119, %v155, %v145
    %162 = vrot.lane.b32.xlu0 %v86, 1
    %v163 = vpop.permute.xlu0 %162
    %164 = vrot.lane.b32.xlu0 %v85, 1
    %v165 = vpop.permute.xlu0 %164
    %166 = vrot.lane.b32.xlu0 %v84, 1
    %v167 = vpop.permute.xlu0 %166
    %168 = vrot.lane.b32.xlu0 %v83, 1
    %v169 = vpop.permute.xlu0 %168
    %170 = vrot.lane.b32.xlu0 %v82, 1
    %v171 = vpop.permute.xlu0 %170
    %172 = vrot.lane.b32.xlu0 %v87, 1
    %v173 = vpop.permute.xlu0 %172
    %v174 = vsel %vm100, %v171, %v173
    %v175 = vsel %vm100, %v169, %v171
    %v176 = vsel %vm100, %v167, %v169
    %v177 = vsel %vm100, %v165, %v167
    %v178 = vsel %vm100, %v163, %v165
    %v179 = vsel %vm100, %v173, %v163
    %180 = vrot.lane.b32.xlu0 %v86, 127
    %v181 = vpop.permute.xlu0 %180
    %182 = vrot.lane.b32.xlu0 %v85, 127
    %v183 = vpop.permute.xlu0 %182
    %184 = vrot.lane.b32.xlu0 %v84, 127
    %v185 = vpop.permute.xlu0 %184
    %186 = vrot.lane.b32.xlu0 %v83, 127
    %v187 = vpop.permute.xlu0 %186
    %188 = vrot.lane.b32.xlu0 %v82, 127
    %v189 = vpop.permute.xlu0 %188
    %190 = vrot.lane.b32.xlu0 %v87, 127
    %v191 = vpop.permute.xlu0 %190
    %v192 = vsel %vm119, %v189, %v191
    %v193 = vsel %vm119, %v187, %v189
    %v194 = vsel %vm119, %v185, %v187
    %v195 = vsel %vm119, %v183, %v185
    %v196 = vsel %vm119, %v181, %v183
    %v197 = vsel %vm119, %v191, %v181
    %v198 = vpack.c.bf16 %v68, %v106
    %v199 = vpack.c.bf16 %v67, %v105
    %v200 = vpack.c.bf16 %v66, %v104
    %v201 = vpack.c.bf16 %v65, %v103
    %v202 = vpack.c.bf16 %v64, %v102
    %v203 = vpack.c.bf16 %v63, %v101
    %v204 = vpack.c.bf16 %v143, %v124
    %v205 = vpack.c.bf16 %v142, %v123
    %v206 = vpack.c.bf16 %v141, %v122
    %v207 = vpack.c.bf16 %v140, %v121
    %v208 = vpack.c.bf16 %v139, %v120
    %v209 = vpack.c.bf16 %v138, %v125
    %v210 = vpack.c.bf16 %v160, %v40
    %v211 = vpack.c.bf16 %v159, %v41
    %v212 = vpack.c.bf16 %v158, %v42
    %v213 = vpack.c.bf16 %v157, %v43
    %v214 = vpack.c.bf16 %v156, %v44
    %v215 = vpack.c.bf16 %v161, %v45
    %v216 = vpack.c.bf16 %v86, %v179
    %v217 = vpack.c.bf16 %v85, %v178
    %v218 = vpack.c.bf16 %v84, %v177
    %v219 = vpack.c.bf16 %v83, %v176
    %v220 = vpack.c.bf16 %v82, %v175
    %v221 = vpack.c.bf16 %v87, %v174
    %v222 = vpack.c.bf16 %v196, %v196
    %v223 = vpack.c.bf16 %v195, %v195
    %v224 = vpack.c.bf16 %v194, %v194
    %v225 = vpack.c.bf16 %v193, %v193
    %v226 = vpack.c.bf16 %v192, %v192
    %v227 = vpack.c.bf16 %v197, %v197
    %vm228 = vcmask 588800
    %v230 = vsel %vm228, %v47, 0
    %vm232 = vcmask 1043456
    %v234 = vsel %vm232, %v222, 0
    %v237 = vsel %vm232, %v223, 0
    %v240 = vsel %vm232, %v224, 0
    %v243 = vsel %vm232, %v225, 0
    %v246 = vsel %vm232, %v226, 0
    %v249 = vsel %vm232, %v227, 0
    %251 = vmatprep.subr.bf16.mxu0 %v199
    %252 = vmatpush1.bf16.msra.mxu0 %v198
    %253 = vmatprep.subr.bf16.mxu0 %v205
    %254 = vmatpush1.bf16.msra.mxu0 %v204
    %255 = vmatprep.subr.bf16.mxu0 %v211
    %256 = vmatpush1.bf16.msra.mxu0 %v210
    %257 = vmatprep.subr.bf16.mxu0 %v217
    %258 = vmatpush1.bf16.msra.mxu0 %v216
    %259 = vmatprep.subr.bf16.mxu0 %v237
    %260 = vmatpush1.bf16.msra.mxu0 %v234
    %261 = vmatprep.subr.bf16.mxu0 0
    %262 = vmatpush1.bf16.msra.mxu0 0
    %263 = vmatprep.subr.bf16.mxu0 0
    %264 = vmatpush1.bf16.msra.mxu0 0
    %265 = vmatprep.subr.bf16.mxu0 0
    %266 = vmatpush1.bf16.msra.mxu0 0
    %267 = vmatprep.subr.bf16.mxu0 0
    %268 = vmatpush1.bf16.msra.mxu0 0
    %269 = vmatprep.subr.bf16.mxu0 0
    %270 = vmatpush1.bf16.msra.mxu0 0
    %271 = vmatprep.subr.bf16.mxu0 0
    %272 = vmatpush1.bf16.msra.mxu0 0
    %273 = vmatprep.subr.bf16.mxu0 0
    %274 = vmatpush1.bf16.msra.mxu0 0
    %275 = vmatprep.subr.bf16.mxu0 0
    %276 = vmatpush1.bf16.msra.mxu0 0
    %277 = vmatprep.subr.bf16.mxu0 0
    %278 = vmatpush1.bf16.msra.mxu0 0
    %279 = vmatprep.subr.bf16.mxu0 0
    %280 = vmatpush1.bf16.msra.mxu0 0
    %281 = vmatprep.subr.bf16.mxu0 0
    %282 = vmatpush1.bf16.msra.mxu0 0
    %283 = vmatprep.mubr.bf16.mxu0 0
    %284 = vmatmul.mubr.bf16.gmra.mrb[0].mxu0 %v230
    %v285 = vpop.f32.mrb[0].mxu0
    %v286 = vadd.f32 0.0, %v285
    %v287 = vpop.f32.mrb[0].mxu0
    %v288 = vadd.f32 0.0, %v287
    %v289 = vpop.f32.mrb[0].mxu0
    %v290 = vpop.f32.mrb[0].mxu0
    %291 = vdwg.mxu0
    %292 = vmatprep.subr.bf16.mxu0 %v201
    %293 = vmatpush1.bf16.msra.mxu0 %v200
    %294 = vmatprep.subr.bf16.mxu0 %v207
    %295 = vmatpush1.bf16.msra.mxu0 %v206
    %296 = vmatprep.subr.bf16.mxu0 %v213
    %297 = vmatpush1.bf16.msra.mxu0 %v212
    %298 = vmatprep.subr.bf16.mxu0 %v219
    %299 = vmatpush1.bf16.msra.mxu0 %v218
    %300 = vmatprep.subr.bf16.mxu0 %v243
    %301 = vmatpush1.bf16.msra.mxu0 %v240
    %302 = vmatprep.subr.bf16.mxu0 0
    %303 = vmatpush1.bf16.msra.mxu0 0
    %304 = vmatprep.subr.bf16.mxu0 0
    %305 = vmatpush1.bf16.msra.mxu0 0
    %306 = vmatprep.subr.bf16.mxu0 0
    %307 = vmatpush1.bf16.msra.mxu0 0
    %308 = vmatprep.subr.bf16.mxu0 0
    %309 = vmatpush1.bf16.msra.mxu0 0
    %310 = vmatprep.subr.bf16.mxu0 0
    %311 = vmatpush1.bf16.msra.mxu0 0
    %312 = vmatprep.subr.bf16.mxu0 0
    %313 = vmatpush1.bf16.msra.mxu0 0
    %314 = vmatprep.subr.bf16.mxu0 0
    %315 = vmatpush1.bf16.msra.mxu0 0
    %316 = vmatprep.subr.bf16.mxu0 0
    %317 = vmatpush1.bf16.msra.mxu0 0
    %318 = vmatprep.subr.bf16.mxu0 0
    %319 = vmatpush1.bf16.msra.mxu0 0
    %320 = vmatprep.subr.bf16.mxu0 0
    %321 = vmatpush1.bf16.msra.mxu0 0
    %322 = vmatprep.subr.bf16.mxu0 0
    %323 = vmatpush1.bf16.msra.mxu0 0
    %324 = vmatprep.mubr.bf16.mxu0 0
    %325 = vmatmul.mubr.bf16.gmra.mrb[0].mxu0 %v230
    %v326 = vpop.f32.mrb[0].mxu0
    %v327 = vadd.f32 0.0, %v326
    %v328 = vpop.f32.mrb[0].mxu0
    %v329 = vadd.f32 0.0, %v328
    %v330 = vpop.f32.mrb[0].mxu0
    %v331 = vpop.f32.mrb[0].mxu0
    %332 = vdwg.mxu0
    %333 = vmatprep.subr.bf16.mxu0 %v203
    %334 = vmatpush1.bf16.msra.mxu0 %v202
    %335 = vmatprep.subr.bf16.mxu0 %v209
    %336 = vmatpush1.bf16.msra.mxu0 %v208
    %337 = vmatprep.subr.bf16.mxu0 %v215
    %338 = vmatpush1.bf16.msra.mxu0 %v214
    %339 = vmatprep.subr.bf16.mxu0 %v221
    %340 = vmatpush1.bf16.msra.mxu0 %v220
    %341 = vmatprep.subr.bf16.mxu0 %v249
    %342 = vmatpush1.bf16.msra.mxu0 %v246
    %343 = vmatprep.subr.bf16.mxu0 0
    %344 = vmatpush1.bf16.msra.mxu0 0
    %345 = vmatprep.subr.bf16.mxu0 0
    %346 = vmatpush1.bf16.msra.mxu0 0
    %347 = vmatprep.subr.bf16.mxu0 0
    %348 = vmatpush1.bf16.msra.mxu0 0
    %349 = vmatprep.subr.bf16.mxu0 0
    %350 = vmatpush1.bf16.msra.mxu0 0
    %351 = vmatprep.subr.bf16.mxu0 0
    %352 = vmatpush1.bf16.msra.mxu0 0
    %353 = vmatprep.subr.bf16.mxu0 0
    %354 = vmatpush1.bf16.msra.mxu0 0
    %355 = vmatprep.subr.bf16.mxu0 0
    %356 = vmatpush1.bf16.msra.mxu0 0
    %357 = vmatprep.subr.bf16.mxu0 0
    %358 = vmatpush1.bf16.msra.mxu0 0
    %359 = vmatprep.subr.bf16.mxu0 0
    %360 = vmatpush1.bf16.msra.mxu0 0
    %361 = vmatprep.subr.bf16.mxu0 0
    %362 = vmatpush1.bf16.msra.mxu0 0
    %363 = vmatprep.subr.bf16.mxu0 0
    %364 = vmatpush1.bf16.msra.mxu0 0
    %365 = vmatprep.mubr.bf16.mxu0 0
    %366 = vmatmul.mubr.bf16.gmra.mrb[0].mxu0 %v230
    %v367 = vpop.f32.mrb[0].mxu0
    %v368 = vadd.f32 0.0, %v367
    %v369 = vpop.f32.mrb[0].mxu0
    %v370 = vadd.f32 0.0, %v369
    %v371 = vpop.f32.mrb[0].mxu0
    %v372 = vpop.f32.mrb[0].mxu0
    %373 = vdwg.mxu0
    %v374 = vld [vmem:[%s2] sm:$0xff]
    %376 = vset.pattern.permute.xlu0 0
    %377 = vperm.xlu0 %376, %v374
    %v378 = vpop.permute.xlu0 %377
    %v380 = vmul.f32 %v286, %v378
    %v381 = vmul.f32 %v288, %v378
    %v382 = vmul.f32 %v327, %v378
    %v383 = vmul.f32 %v329, %v378
    %v384 = vmul.f32 %v368, %v378
    %v385 = vmul.f32 %v370, %v378
    %v386 = vld [vmem:[%s3] sm:$0xff]
    %388 = vset.pattern.permute.xlu0 0
    %389 = vperm.xlu0 %388, %v386
    %v390 = vpop.permute.xlu0 %389
    %v392 = vadd.f32 %v380, %v390
    %v393 = vadd.f32 %v381, %v390
    %v394 = vadd.f32 %v382, %v390
    %v395 = vadd.f32 %v383, %v390
    %v396 = vadd.f32 %v384, %v390
    %v397 = vadd.f32 %v385, %v390
    %v398 = vmax.f32 %v392, 0.0
    %v399 = vmax.f32 %v393, 0.0
    %v400 = vmax.f32 %v394, 0.0
    %v401 = vmax.f32 %v395, 0.0
    %v402 = vmax.f32 %v396, 0.0
    %v403 = vmax.f32 %v397, 0.0
    %v405 = vlaneseq
    %v406 = vshrl.u32 %v405, 7
    %v407 = vsub.s32 0, %v406
    %v408 = vrot.slane %v46, %v407
    %v409 = vlaneseq
    %v410 = vshrl.u32 %v409, 7
    %v411 = vsub.s32 1, %v410
    %v412 = vrot.slane %v46, %v411
    %v413 = vlaneseq
    %v414 = vshrl.u32 %v413, 7
    %v415 = vsub.s32 2, %v414
    %v416 = vrot.slane %v46, %v415
    %v417 = vlaneseq
    %v418 = vshrl.u32 %v417, 7
    %v419 = vsub.s32 3, %v418
    %v420 = vrot.slane %v46, %v419
    %v421 = vlaneseq
    %v422 = vshrl.u32 %v421, 7
    %v423 = vsub.s32 4, %v422
    %v424 = vrot.slane %v46, %v423
    %v425 = vlaneseq
    %v426 = vshrl.u32 %v425, 7
    %v427 = vsub.s32 5, %v426
    %v428 = vrot.slane %v46, %v427
    %v435 = vmul.f32 %v398, %v408
    %v436 = vmul.f32 %v399, %v412
    %v437 = vmul.f32 %v400, %v416
    %v438 = vmul.f32 %v401, %v420
    %v439 = vmul.f32 %v402, %v424
    %v440 = vmul.f32 %v403, %v428
    %v441 = vld [vmem:[%s4] sm:$0xf]
    %442 = vrot.lane.b32.xlu0 %v435, 18
    %v443 = vpop.permute.xlu0 %442
    %444 = vrot.lane.b32.xlu0 %v436, 18
    %v445 = vpop.permute.xlu0 %444
    %446 = vrot.lane.b32.xlu0 %v437, 18
    %v447 = vpop.permute.xlu0 %446
    %448 = vrot.lane.b32.xlu0 %v438, 18
    %v449 = vpop.permute.xlu0 %448
    %450 = vrot.lane.b32.xlu0 %v439, 18
    %v451 = vpop.permute.xlu0 %450
    %452 = vrot.lane.b32.xlu0 %v440, 18
    %v453 = vpop.permute.xlu0 %452
    %v454 = vsel %vm62, %v451, %v453
    %v455 = vsel %vm62, %v449, %v451
    %v456 = vsel %vm62, %v447, %v449
    %v457 = vsel %vm62, %v445, %v447
    %v458 = vsel %vm62, %v443, %v445
    %v459 = vsel %vm62, %v453, %v443
    %460 = vrot.lane.b32.xlu0 %v435, 110
    %v461 = vpop.permute.xlu0 %460
    %462 = vrot.lane.b32.xlu0 %v436, 110
    %v463 = vpop.permute.xlu0 %462
    %464 = vrot.lane.b32.xlu0 %v437, 110
    %v465 = vpop.permute.xlu0 %464
    %466 = vrot.lane.b32.xlu0 %v438, 110
    %v467 = vpop.permute.xlu0 %466
    %468 = vrot.lane.b32.xlu0 %v439, 110
    %v469 = vpop.permute.xlu0 %468
    %470 = vrot.lane.b32.xlu0 %v440, 110
    %v471 = vpop.permute.xlu0 %470
    %v472 = vsel %vm81, %v469, %v471
    %v473 = vsel %vm81, %v467, %v469
    %v474 = vsel %vm81, %v465, %v467
    %v475 = vsel %vm81, %v463, %v465
    %v476 = vsel %vm81, %v461, %v463
    %v477 = vsel %vm81, %v471, %v461
    %478 = vrot.lane.b32.xlu0 %v459, 1
    %v479 = vpop.permute.xlu0 %478
    %480 = vrot.lane.b32.xlu0 %v458, 1
    %v481 = vpop.permute.xlu0 %480
    %482 = vrot.lane.b32.xlu0 %v457, 1
    %v483 = vpop.permute.xlu0 %482
    %484 = vrot.lane.b32.xlu0 %v456, 1
    %v485 = vpop.permute.xlu0 %484
    %486 = vrot.lane.b32.xlu0 %v455, 1
    %v487 = vpop.permute.xlu0 %486
    %488 = vrot.lane.b32.xlu0 %v454, 1
    %v489 = vpop.permute.xlu0 %488
    %v490 = vsel %vm100, %v487, %v489
    %v491 = vsel %vm100, %v485, %v487
    %v492 = vsel %vm100, %v483, %v485
    %v493 = vsel %vm100, %v481, %v483
    %v494 = vsel %vm100, %v479, %v481
    %v495 = vsel %vm100, %v489, %v479
    %496 = vrot.lane.b32.xlu0 %v459, 127
    %v497 = vpop.permute.xlu0 %496
    %498 = vrot.lane.b32.xlu0 %v458, 127
    %v499 = vpop.permute.xlu0 %498
    %500 = vrot.lane.b32.xlu0 %v457, 127
    %v501 = vpop.permute.xlu0 %500
    %502 = vrot.lane.b32.xlu0 %v456, 127
    %v503 = vpop.permute.xlu0 %502
    %504 = vrot.lane.b32.xlu0 %v455, 127
    %v505 = vpop.permute.xlu0 %504
    %506 = vrot.lane.b32.xlu0 %v454, 127
    %v507 = vpop.permute.xlu0 %506
    %v508 = vsel %vm119, %v505, %v507
    %v509 = vsel %vm119, %v503, %v505
    %v510 = vsel %vm119, %v501, %v503
    %v511 = vsel %vm119, %v499, %v501
    %v512 = vsel %vm119, %v497, %v499
    %v513 = vsel %vm119, %v507, %v497
    %514 = vrot.lane.b32.xlu0 %v435, 1
    %v515 = vpop.permute.xlu0 %514
    %516 = vrot.lane.b32.xlu0 %v436, 1
    %v517 = vpop.permute.xlu0 %516
    %518 = vrot.lane.b32.xlu0 %v437, 1
    %v519 = vpop.permute.xlu0 %518
    %520 = vrot.lane.b32.xlu0 %v438, 1
    %v521 = vpop.permute.xlu0 %520
    %522 = vrot.lane.b32.xlu0 %v439, 1
    %v523 = vpop.permute.xlu0 %522
    %524 = vrot.lane.b32.xlu0 %v440, 1
    %v525 = vpop.permute.xlu0 %524
    %v526 = vsel %vm100, %v523, %v525
    %v527 = vsel %vm100, %v521, %v523
    %v528 = vsel %vm100, %v519, %v521
    %v529 = vsel %vm100, %v517, %v519
    %v530 = vsel %vm100, %v515, %v517
    %v531 = vsel %vm100, %v525, %v515
    %532 = vrot.lane.b32.xlu0 %v435, 127
    %v533 = vpop.permute.xlu0 %532
    %534 = vrot.lane.b32.xlu0 %v436, 127
    %v535 = vpop.permute.xlu0 %534
    %536 = vrot.lane.b32.xlu0 %v437, 127
    %v537 = vpop.permute.xlu0 %536
    %538 = vrot.lane.b32.xlu0 %v438, 127
    %v539 = vpop.permute.xlu0 %538
    %540 = vrot.lane.b32.xlu0 %v439, 127
    %v541 = vpop.permute.xlu0 %540
    %542 = vrot.lane.b32.xlu0 %v440, 127
    %v543 = vpop.permute.xlu0 %542
    %v544 = vsel %vm119, %v541, %v543
    %v545 = vsel %vm119, %v539, %v541
    %v546 = vsel %vm119, %v537, %v539
    %v547 = vsel %vm119, %v535, %v537
    %v548 = vsel %vm119, %v533, %v535
    %v549 = vsel %vm119, %v543, %v533
    %550 = vrot.lane.b32.xlu0 %v476, 1
    %v551 = vpop.permute.xlu0 %550
    %552 = vrot.lane.b32.xlu0 %v475, 1
    %v553 = vpop.permute.xlu0 %552
    %554 = vrot.lane.b32.xlu0 %v474, 1
    %v555 = vpop.permute.xlu0 %554
    %556 = vrot.lane.b32.xlu0 %v473, 1
    %v557 = vpop.permute.xlu0 %556
    %558 = vrot.lane.b32.xlu0 %v472, 1
    %v559 = vpop.permute.xlu0 %558
    %560 = vrot.lane.b32.xlu0 %v477, 1
    %v561 = vpop.permute.xlu0 %560
    %v562 = vsel %vm100, %v559, %v561
    %v563 = vsel %vm100, %v557, %v559
    %v564 = vsel %vm100, %v555, %v557
    %v565 = vsel %vm100, %v553, %v555
    %v566 = vsel %vm100, %v551, %v553
    %v567 = vsel %vm100, %v561, %v551
    %568 = vrot.lane.b32.xlu0 %v476, 127
    %v569 = vpop.permute.xlu0 %568
    %570 = vrot.lane.b32.xlu0 %v475, 127
    %v571 = vpop.permute.xlu0 %570
    %572 = vrot.lane.b32.xlu0 %v474, 127
    %v573 = vpop.permute.xlu0 %572
    %574 = vrot.lane.b32.xlu0 %v473, 127
    %v575 = vpop.permute.xlu0 %574
    %576 = vrot.lane.b32.xlu0 %v472, 127
    %v577 = vpop.permute.xlu0 %576
    %578 = vrot.lane.b32.xlu0 %v477, 127
    %v579 = vpop.permute.xlu0 %578
    %v580 = vsel %vm119, %v577, %v579
    %v581 = vsel %vm119, %v575, %v577
    %v582 = vsel %vm119, %v573, %v575
    %v583 = vsel %vm119, %v571, %v573
    %v584 = vsel %vm119, %v569, %v571
    %v585 = vsel %vm119, %v579, %v569
    %v586 = vpack.c.bf16 %v459, %v495
    %v587 = vpack.c.bf16 %v458, %v494
    %v588 = vpack.c.bf16 %v457, %v493
    %v589 = vpack.c.bf16 %v456, %v492
    %v590 = vpack.c.bf16 %v455, %v491
    %v591 = vpack.c.bf16 %v454, %v490
    %v592 = vpack.c.bf16 %v531, %v512
    %v593 = vpack.c.bf16 %v530, %v511
    %v594 = vpack.c.bf16 %v529, %v510
    %v595 = vpack.c.bf16 %v528, %v509
    %v596 = vpack.c.bf16 %v527, %v508
    %v597 = vpack.c.bf16 %v526, %v513
    %v598 = vpack.c.bf16 %v548, %v435
    %v599 = vpack.c.bf16 %v547, %v436
    %v600 = vpack.c.bf16 %v546, %v437
    %v601 = vpack.c.bf16 %v545, %v438
    %v602 = vpack.c.bf16 %v544, %v439
    %v603 = vpack.c.bf16 %v549, %v440
    %v604 = vpack.c.bf16 %v476, %v567
    %v605 = vpack.c.bf16 %v475, %v566
    %v606 = vpack.c.bf16 %v474, %v565
    %v607 = vpack.c.bf16 %v473, %v564
    %v608 = vpack.c.bf16 %v472, %v563
    %v609 = vpack.c.bf16 %v477, %v562
    %v610 = vpack.c.bf16 %v584, %v584
    %v611 = vpack.c.bf16 %v583, %v583
    %v612 = vpack.c.bf16 %v582, %v582
    %v613 = vpack.c.bf16 %v581, %v581
    %v614 = vpack.c.bf16 %v580, %v580
    %v615 = vpack.c.bf16 %v585, %v585
    %v617 = vsel %vm228, %v441, 0
    %v620 = vsel %vm232, %v610, 0
    %v623 = vsel %vm232, %v611, 0
    %v626 = vsel %vm232, %v612, 0
    %v629 = vsel %vm232, %v613, 0
    %v632 = vsel %vm232, %v614, 0
    %v635 = vsel %vm232, %v615, 0
    %637 = vmatprep.subr.bf16.mxu0 %v587
    %638 = vmatpush1.bf16.msra.mxu0 %v586
    %639 = vmatprep.subr.bf16.mxu0 %v593
    %640 = vmatpush1.bf16.msra.mxu0 %v592
    %641 = vmatprep.subr.bf16.mxu0 %v599
    %642 = vmatpush1.bf16.msra.mxu0 %v598
    %643 = vmatprep.subr.bf16.mxu0 %v605
    %644 = vmatpush1.bf16.msra.mxu0 %v604
    %645 = vmatprep.subr.bf16.mxu0 %v623
    %646 = vmatpush1.bf16.msra.mxu0 %v620
    %647 = vmatprep.subr.bf16.mxu0 0
    %648 = vmatpush1.bf16.msra.mxu0 0
    %649 = vmatprep.subr.bf16.mxu0 0
    %650 = vmatpush1.bf16.msra.mxu0 0
    %651 = vmatprep.subr.bf16.mxu0 0
    %652 = vmatpush1.bf16.msra.mxu0 0
    %653 = vmatprep.subr.bf16.mxu0 0
    %654 = vmatpush1.bf16.msra.mxu0 0
    %655 = vmatprep.subr.bf16.mxu0 0
    %656 = vmatpush1.bf16.msra.mxu0 0
    %657 = vmatprep.subr.bf16.mxu0 0
    %658 = vmatpush1.bf16.msra.mxu0 0
    %659 = vmatprep.subr.bf16.mxu0 0
    %660 = vmatpush1.bf16.msra.mxu0 0
    %661 = vmatprep.subr.bf16.mxu0 0
    %662 = vmatpush1.bf16.msra.mxu0 0
    %663 = vmatprep.subr.bf16.mxu0 0
    %664 = vmatpush1.bf16.msra.mxu0 0
    %665 = vmatprep.subr.bf16.mxu0 0
    %666 = vmatpush1.bf16.msra.mxu0 0
    %667 = vmatprep.subr.bf16.mxu0 0
    %668 = vmatpush1.bf16.msra.mxu0 0
    %669 = vmatprep.mubr.bf16.mxu0 0
    %670 = vmatmul.mubr.bf16.gmra.mrb[0].mxu0 %v617
    %v671 = vpop.f32.mrb[0].mxu0
    %v672 = vadd.f32 0.0, %v671
    %v673 = vpop.f32.mrb[0].mxu0
    %v674 = vadd.f32 0.0, %v673
    %v675 = vpop.f32.mrb[0].mxu0
    %v676 = vpop.f32.mrb[0].mxu0
    %677 = vdwg.mxu0
    %678 = vmatprep.subr.bf16.mxu0 %v589
    %679 = vmatpush1.bf16.msra.mxu0 %v588
    %680 = vmatprep.subr.bf16.mxu0 %v595
    %681 = vmatpush1.bf16.msra.mxu0 %v594
    %682 = vmatprep.subr.bf16.mxu0 %v601
    %683 = vmatpush1.bf16.msra.mxu0 %v600
    %684 = vmatprep.subr.bf16.mxu0 %v607
    %685 = vmatpush1.bf16.msra.mxu0 %v606
    %686 = vmatprep.subr.bf16.mxu0 %v629
    %687 = vmatpush1.bf16.msra.mxu0 %v626
    %688 = vmatprep.subr.bf16.mxu0 0
    %689 = vmatpush1.bf16.msra.mxu0 0
    %690 = vmatprep.subr.bf16.mxu0 0
    %691 = vmatpush1.bf16.msra.mxu0 0
    %692 = vmatprep.subr.bf16.mxu0 0
    %693 = vmatpush1.bf16.msra.mxu0 0
    %694 = vmatprep.subr.bf16.mxu0 0
    %695 = vmatpush1.bf16.msra.mxu0 0
    %696 = vmatprep.subr.bf16.mxu0 0
    %697 = vmatpush1.bf16.msra.mxu0 0
    %698 = vmatprep.subr.bf16.mxu0 0
    %699 = vmatpush1.bf16.msra.mxu0 0
    %700 = vmatprep.subr.bf16.mxu0 0
    %701 = vmatpush1.bf16.msra.mxu0 0
    %702 = vmatprep.subr.bf16.mxu0 0
    %703 = vmatpush1.bf16.msra.mxu0 0
    %704 = vmatprep.subr.bf16.mxu0 0
    %705 = vmatpush1.bf16.msra.mxu0 0
    %706 = vmatprep.subr.bf16.mxu0 0
    %707 = vmatpush1.bf16.msra.mxu0 0
    %708 = vmatprep.subr.bf16.mxu0 0
    %709 = vmatpush1.bf16.msra.mxu0 0
    %710 = vmatprep.mubr.bf16.mxu0 0
    %711 = vmatmul.mubr.bf16.gmra.mrb[0].mxu0 %v617
    %v712 = vpop.f32.mrb[0].mxu0
    %v713 = vadd.f32 0.0, %v712
    %v714 = vpop.f32.mrb[0].mxu0
    %v715 = vadd.f32 0.0, %v714
    %v716 = vpop.f32.mrb[0].mxu0
    %v717 = vpop.f32.mrb[0].mxu0
    %718 = vdwg.mxu0
    %719 = vmatprep.subr.bf16.mxu0 %v591
    %720 = vmatpush1.bf16.msra.mxu0 %v590
    %721 = vmatprep.subr.bf16.mxu0 %v597
    %722 = vmatpush1.bf16.msra.mxu0 %v596
    %723 = vmatprep.subr.bf16.mxu0 %v603
    %724 = vmatpush1.bf16.msra.mxu0 %v602
    %725 = vmatprep.subr.bf16.mxu0 %v609
    %726 = vmatpush1.bf16.msra.mxu0 %v608
    %727 = vmatprep.subr.bf16.mxu0 %v635
    %728 = vmatpush1.bf16.msra.mxu0 %v632
    %729 = vmatprep.subr.bf16.mxu0 0
    %730 = vmatpush1.bf16.msra.mxu0 0
    %731 = vmatprep.subr.bf16.mxu0 0
    %732 = vmatpush1.bf16.msra.mxu0 0
    %733 = vmatprep.subr.bf16.mxu0 0
    %734 = vmatpush1.bf16.msra.mxu0 0
    %735 = vmatprep.subr.bf16.mxu0 0
    %736 = vmatpush1.bf16.msra.mxu0 0
    %737 = vmatprep.subr.bf16.mxu0 0
    %738 = vmatpush1.bf16.msra.mxu0 0
    %739 = vmatprep.subr.bf16.mxu0 0
    %740 = vmatpush1.bf16.msra.mxu0 0
    %741 = vmatprep.subr.bf16.mxu0 0
    %742 = vmatpush1.bf16.msra.mxu0 0
    %743 = vmatprep.subr.bf16.mxu0 0
    %744 = vmatpush1.bf16.msra.mxu0 0
    %745 = vmatprep.subr.bf16.mxu0 0
    %746 = vmatpush1.bf16.msra.mxu0 0
    %747 = vmatprep.subr.bf16.mxu0 0
    %748 = vmatpush1.bf16.msra.mxu0 0
    %749 = vmatprep.subr.bf16.mxu0 0
    %750 = vmatpush1.bf16.msra.mxu0 0
    %751 = vmatprep.mubr.bf16.mxu0 0
    %752 = vmatmul.mubr.bf16.gmra.mrb[0].mxu0 %v617
    %v753 = vpop.f32.mrb[0].mxu0
    %v754 = vadd.f32 0.0, %v753
    %v755 = vpop.f32.mrb[0].mxu0
    %v756 = vadd.f32 0.0, %v755
    %v757 = vpop.f32.mrb[0].mxu0
    %v758 = vpop.f32.mrb[0].mxu0
    %759 = vdwg.mxu0
    %v760 = vld [vmem:[%s5] sm:$0xff]
    %762 = vset.pattern.permute.xlu0 0
    %763 = vperm.xlu0 %762, %v760
    %v764 = vpop.permute.xlu0 %763
    %v766 = vmul.f32 %v672, %v764
    %v767 = vmul.f32 %v674, %v764
    %v768 = vmul.f32 %v713, %v764
    %v769 = vmul.f32 %v715, %v764
    %v770 = vmul.f32 %v754, %v764
    %v771 = vmul.f32 %v756, %v764
    %v772 = vld [vmem:[%s6] sm:$0xff]
    %774 = vset.pattern.permute.xlu0 0
    %775 = vperm.xlu0 %774, %v772
    %v776 = vpop.permute.xlu0 %775
    %v778 = vadd.f32 %v766, %v776
    %v779 = vadd.f32 %v767, %v776
    %v780 = vadd.f32 %v768, %v776
    %v781 = vadd.f32 %v769, %v776
    %v782 = vadd.f32 %v770, %v776
    %v783 = vadd.f32 %v771, %v776
    %v784 = vmax.f32 %v778, 0.0
    %v785 = vmax.f32 %v779, 0.0
    %v786 = vmax.f32 %v780, 0.0
    %v787 = vmax.f32 %v781, 0.0
    %v788 = vmax.f32 %v782, 0.0
    %v789 = vmax.f32 %v783, 0.0
    %v790 = vld [vmem:[%s8] sm:$0xf]
    %v791 = vld [vmem:[%s9] sm:$0xff]
    %793 = vset.pattern.permute.xlu0 0
    %794 = vperm.xlu0 %793, %v791
    %v795 = vpop.permute.xlu0 %794
    %v800 = vunpack.c.l.b16 %v37
    %v801 = vunpack.c.h.b16 %v37
    %v802 = vunpack.c.l.b16 %v38
    %v803 = vunpack.c.h.b16 %v38
    %v804 = vunpack.c.l.b16 %v39
    %v805 = vunpack.c.h.b16 %v39
    %v806 = vpack.c.b16 %v800, %v800
    %v807 = vpack.c.b16 %v801, %v801
    %v808 = vpack.c.b16 %v802, %v802
    %v809 = vpack.c.b16 %v803, %v803
    %v810 = vpack.c.b16 %v804, %v804
    %v811 = vpack.c.b16 %v805, %v805
    %vm812 = vcmask 64512
    %v814 = vsel %vm812, %v790, 0
    %v817 = vsel %vm232, %v806, 0
    %v820 = vsel %vm232, %v807, 0
    %v823 = vsel %vm232, %v808, 0
    %v826 = vsel %vm232, %v809, 0
    %v829 = vsel %vm232, %v810, 0
    %v832 = vsel %vm232, %v811, 0
    %834 = vmatprep.subr.bf16.mxu0 %v820
    %835 = vmatpush1.bf16.msra.mxu0 %v817
    %836 = vmatprep.subr.bf16.mxu0 0
    %837 = vmatpush1.bf16.msra.mxu0 0
    %838 = vmatprep.subr.bf16.mxu0 0
    %839 = vmatpush1.bf16.msra.mxu0 0
    %840 = vmatprep.subr.bf16.mxu0 0
    %841 = vmatpush1.bf16.msra.mxu0 0
    %842 = vmatprep.subr.bf16.mxu0 0
    %843 = vmatpush1.bf16.msra.mxu0 0
    %844 = vmatprep.subr.bf16.mxu0 0
    %845 = vmatpush1.bf16.msra.mxu0 0
    %846 = vmatprep.subr.bf16.mxu0 0
    %847 = vmatpush1.bf16.msra.mxu0 0
    %848 = vmatprep.subr.bf16.mxu0 0
    %849 = vmatpush1.bf16.msra.mxu0 0
    %850 = vmatprep.subr.bf16.mxu0 0
    %851 = vmatpush1.bf16.msra.mxu0 0
    %852 = vmatprep.subr.bf16.mxu0 0
    %853 = vmatpush1.bf16.msra.mxu0 0
    %854 = vmatprep.subr.bf16.mxu0 0
    %855 = vmatpush1.bf16.msra.mxu0 0
    %856 = vmatprep.subr.bf16.mxu0 0
    %857 = vmatpush1.bf16.msra.mxu0 0
    %858 = vmatprep.subr.bf16.mxu0 0
    %859 = vmatpush1.bf16.msra.mxu0 0
    %860 = vmatprep.subr.bf16.mxu0 0
    %861 = vmatpush1.bf16.msra.mxu0 0
    %862 = vmatprep.subr.bf16.mxu0 0
    %863 = vmatpush1.bf16.msra.mxu0 0
    %864 = vmatprep.subr.bf16.mxu0 0
    %865 = vmatpush1.bf16.msra.mxu0 0
    %866 = vmatprep.mubr.bf16.mxu0 0
    %867 = vmatmul.mubr.bf16.gmra.mrb[0].mxu0 %v814
    %v868 = vpop.f32.mrb[0].mxu0
    %v869 = vadd.f32 %v795, %v868
    %v870 = vpop.f32.mrb[0].mxu0
    %v871 = vadd.f32 %v795, %v870
    %v872 = vpop.f32.mrb[0].mxu0
    %v873 = vpop.f32.mrb[0].mxu0
    %874 = vdwg.mxu0
    %875 = vmatprep.subr.bf16.mxu0 %v826
    %876 = vmatpush1.bf16.msra.mxu0 %v823
    %877 = vmatprep.subr.bf16.mxu0 0
    %878 = vmatpush1.bf16.msra.mxu0 0
    %879 = vmatprep.subr.bf16.mxu0 0
    %880 = vmatpush1.bf16.msra.mxu0 0
    %881 = vmatprep.subr.bf16.mxu0 0
    %882 = vmatpush1.bf16.msra.mxu0 0
    %883 = vmatprep.subr.bf16.mxu0 0
    %884 = vmatpush1.bf16.msra.mxu0 0
    %885 = vmatprep.subr.bf16.mxu0 0
    %886 = vmatpush1.bf16.msra.mxu0 0
    %887 = vmatprep.subr.bf16.mxu0 0
    %888 = vmatpush1.bf16.msra.mxu0 0
    %889 = vmatprep.subr.bf16.mxu0 0
    %890 = vmatpush1.bf16.msra.mxu0 0
    %891 = vmatprep.subr.bf16.mxu0 0
    %892 = vmatpush1.bf16.msra.mxu0 0
    %893 = vmatprep.subr.bf16.mxu0 0
    %894 = vmatpush1.bf16.msra.mxu0 0
    %895 = vmatprep.subr.bf16.mxu0 0
    %896 = vmatpush1.bf16.msra.mxu0 0
    %897 = vmatprep.subr.bf16.mxu0 0
    %898 = vmatpush1.bf16.msra.mxu0 0
    %899 = vmatprep.subr.bf16.mxu0 0
    %900 = vmatpush1.bf16.msra.mxu0 0
    %901 = vmatprep.subr.bf16.mxu0 0
    %902 = vmatpush1.bf16.msra.mxu0 0
    %903 = vmatprep.subr.bf16.mxu0 0
    %904 = vmatpush1.bf16.msra.mxu0 0
    %905 = vmatprep.subr.bf16.mxu0 0
    %906 = vmatpush1.bf16.msra.mxu0 0
    %907 = vmatprep.mubr.bf16.mxu0 0
    %908 = vmatmul.mubr.bf16.gmra.mrb[0].mxu0 %v814
    %v909 = vpop.f32.mrb[0].mxu0
    %v910 = vadd.f32 %v795, %v909
    %v911 = vpop.f32.mrb[0].mxu0
    %v912 = vadd.f32 %v795, %v911
    %v913 = vpop.f32.mrb[0].mxu0
    %v914 = vpop.f32.mrb[0].mxu0
    %915 = vdwg.mxu0
    %916 = vmatprep.subr.bf16.mxu0 %v832
    %917 = vmatpush1.bf16.msra.mxu0 %v829
    %918 = vmatprep.subr.bf16.mxu0 0
    %919 = vmatpush1.bf16.msra.mxu0 0
    %920 = vmatprep.subr.bf16.mxu0 0
    %921 = vmatpush1.bf16.msra.mxu0 0
    %922 = vmatprep.subr.bf16.mxu0 0
    %923 = vmatpush1.bf16.msra.mxu0 0
    %924 = vmatprep.subr.bf16.mxu0 0
    %925 = vmatpush1.bf16.msra.mxu0 0
    %926 = vmatprep.subr.bf16.mxu0 0
    %927 = vmatpush1.bf16.msra.mxu0 0
    %928 = vmatprep.subr.bf16.mxu0 0
    %929 = vmatpush1.bf16.msra.mxu0 0
    %930 = vmatprep.subr.bf16.mxu0 0
    %931 = vmatpush1.bf16.msra.mxu0 0
    %932 = vmatprep.subr.bf16.mxu0 0
    %933 = vmatpush1.bf16.msra.mxu0 0
    %934 = vmatprep.subr.bf16.mxu0 0
    %935 = vmatpush1.bf16.msra.mxu0 0
    %936 = vmatprep.subr.bf16.mxu0 0
    %937 = vmatpush1.bf16.msra.mxu0 0
    %938 = vmatprep.subr.bf16.mxu0 0
    %939 = vmatpush1.bf16.msra.mxu0 0
    %940 = vmatprep.subr.bf16.mxu0 0
    %941 = vmatpush1.bf16.msra.mxu0 0
    %942 = vmatprep.subr.bf16.mxu0 0
    %943 = vmatpush1.bf16.msra.mxu0 0
    %944 = vmatprep.subr.bf16.mxu0 0
    %945 = vmatpush1.bf16.msra.mxu0 0
    %946 = vmatprep.subr.bf16.mxu0 0
    %947 = vmatpush1.bf16.msra.mxu0 0
    %948 = vmatprep.mubr.bf16.mxu0 0
    %949 = vmatmul.mubr.bf16.gmra.mrb[0].mxu0 %v814
    %v950 = vpop.f32.mrb[0].mxu0
    %v951 = vadd.f32 %v795, %v950
    %v952 = vpop.f32.mrb[0].mxu0
    %v953 = vadd.f32 %v795, %v952
    %v954 = vpop.f32.mrb[0].mxu0
    %v955 = vpop.f32.mrb[0].mxu0
    %956 = vdwg.mxu0
    %v957 = vadd.f32 %v784, %v869
    %v958 = vadd.f32 %v785, %v871
    %v959 = vadd.f32 %v786, %v910
    %v960 = vadd.f32 %v787, %v912
    %v961 = vadd.f32 %v788, %v951
    %v962 = vadd.f32 %v789, %v953
    %v963 = vmul.f32 %v957, %v408
    %v964 = vmul.f32 %v958, %v412
    %v965 = vmul.f32 %v959, %v416
    %v966 = vmul.f32 %v960, %v420
    %v967 = vmul.f32 %v961, %v424
    %v968 = vmul.f32 %v962, %v428
    %969 = vst [vmem:[#allocation2] sm:$0xff] %v963
    %970 = vst [vmem:[#allocation2 + $0x8] sm:$0xff] %v964
    %971 = vst [vmem:[#allocation2 + $0x10] sm:$0xff] %v965
    %972 = vst [vmem:[#allocation2 + $0x18] sm:$0xff] %v966
    %973 = vst [vmem:[#allocation2 + $0x20] sm:$0xff] %v967
    %974 = vst [vmem:[#allocation2 + $0x28] sm:$0xff] %v968
    // Predicated region
    $region42: #{tpu_custom_call.1} parent=1 // pred_check
      _
    $region43: #{tpu_custom_call.1} parent=1 // pred_check_branch
      %976 = sbr.rel (0) target = $region45
    $region44: #{tpu_custom_call.1} parent=1 // pred_region
      %s978 = ssub.s32 768, 768
      %979 = vsyncadd [#allocation3], %s978
      %s981 = sshll.u32 [#allocation2], 4
      %s982 = int_to_ptr.vmem [resolvable:$true] %s981
      %984 = dma.vmem_to_hbm [thread:$0]  %s982, 768, %s10, [#allocation3]
    $region45: #{tpu_custom_call.1} parent=1 // pred_fallthru
      _
    // Predicated region
    $region46: #{tpu_custom_call.1} parent=1 // pred_check
      _
    $region47: #{tpu_custom_call.1} parent=1 // pred_check_branch
      %986 = sbr.rel (0) target = $region49
    $region48: #{tpu_custom_call.1} parent=1 // pred_region
      %987 = dma.done [#allocation3], 768
    $region49: #{tpu_custom_call.1} parent=1 // pred_fallthru
      _
    %988 = vsyncpa [#allocation3], 1

</llo_original>
